<compile_context>
chip_gen: v5e
topology: v5e:2x2
jax: 0.10.0
libtpu: 0.0.40
codegen_flags: <defaults>
</compile_context>

<pallas_src>
import functools

import jax
import jax.numpy as jnp
from jax.experimental import pallas as pl
from jax.experimental.pallas import tpu as pltpu


def _rup(x, m):
    return ((x + m - 1) // m) * m


def _lrelu(x):
    # nn.LeakyReLU default negative_slope = 0.01
    return jnp.where(x > 0, x, 0.01 * x)


def _hswish(x):
    # nn.Hardswish: x * relu6(x + 3) / 6
    return x * jnp.clip(x + 3.0, 0.0, 6.0) * (1.0 / 6.0)


# ---------------------------------------------------------------------------
# Static packing layout (pure Python) shared by pack_params and the kernel
# ---------------------------------------------------------------------------
def _packing_meta(mid, K, N):
    C = 6
    din_nat = C * N * K + C * K * N            # h-branch cols + w-branch cols = 12*K*N
    Din = _rup(din_nat, 128)                   # lane-pad the input slab
    C1 = (K + N) * 2 * mid                     # fused conv1 output width
    C2 = (K + N) * mid                         # fused conv2 output width
    act = 2 * K * N
    act_pad = _rup(act, 128)                   # lane-dense final store
    wdims = [                                  # (name, rows_in, cols_out), pack order
        ("wc1", Din, C1), ("wc2", C1, C2), ("wl", C2, 4 * mid),
        ("w1", 4 * mid, 2 * mid), ("w2", 2 * mid, mid),
        ("wd1", mid, mid), ("wd2", 2 * mid, 2 * mid),
        ("w3", 4 * mid, 2 * mid), ("w4", 2 * mid, act_pad),
    ]
    maxc = _rup(max(c for _, _, c in wdims), 128)
    woff, r = {}, 0
    for name, rin, cout in wdims:
        woff[name] = (r, rin, cout)
        r += _rup(rin, 16)                     # bf16 sublane-tile aligned offsets
    bdims = [("bc1", C1), ("bc2", C2), ("bl", 4 * mid), ("b1", 2 * mid),
             ("b2", mid), ("bd1", mid), ("bd2", 2 * mid), ("b3", 2 * mid),
             ("b4", act_pad)]
    brow = {name: (i, cout) for i, (name, cout) in enumerate(bdims)}
    return dict(din_nat=din_nat, Din=Din, C1=C1, C2=C2, act=act, act_pad=act_pad,
                maxc=maxc, woff=woff, brow=brow,
                wrows=_rup(r, 16), brows=_rup(len(bdims), 8))


# ---------------------------------------------------------------------------
# Parameter construction (deterministic, torch layout)
# ---------------------------------------------------------------------------
def init_params(key, mid_dim, K, N):
    C = 6
    act = 2 * K * N
    shapes = {
        # BiConvNet
        "cnn_h_conv1_w": (2 * mid_dim, C, 1, N), "cnn_h_conv1_b": (2 * mid_dim,),
        "cnn_h_conv2_w": (mid_dim, 2 * mid_dim, 1, 1), "cnn_h_conv2_b": (mid_dim,),
        "linear_h_w": (4 * mid_dim, K * mid_dim), "linear_h_b": (4 * mid_dim,),
        "cnn_w_conv1_w": (2 * mid_dim, C, K, 1), "cnn_w_conv1_b": (2 * mid_dim,),
        "cnn_w_conv2_w": (mid_dim, 2 * mid_dim, 1, 1), "cnn_w_conv2_b": (mid_dim,),
        "linear_w_w": (4 * mid_dim, N * mid_dim), "linear_w_b": (4 * mid_dim,),
        # trunk
        "lin1_w": (2 * mid_dim, 4 * mid_dim), "lin1_b": (2 * mid_dim,),
        "lin2_w": (mid_dim, 2 * mid_dim), "lin2_b": (mid_dim,),
        "dense1_w": (mid_dim, mid_dim), "dense1_b": (mid_dim,),
        "dense2_w": (2 * mid_dim, 2 * mid_dim), "dense2_b": (2 * mid_dim,),
        "lin3_w": (2 * mid_dim, 4 * mid_dim), "lin3_b": (2 * mid_dim,),
        "lin4_w": (act, 2 * mid_dim), "lin4_b": (act,),
    }
    names = sorted(shapes)
    keys = jax.random.split(key, len(names))
    return {n: jax.random.normal(k, shapes[n], jnp.float32) * 0.1
            for n, k in zip(names, keys)}


def pack_params(params, mid, K, N):
    """One-time (eager) packing: torch-layout params -> bf16 weight slab + f32 bias slab."""
    meta = _packing_meta(mid, K, N)
    C, m, twoM = 6, mid, 2 * mid
    Din, C1, C2 = meta["Din"], meta["C1"], meta["C2"]

    # per-position conv blocks (rows = input cols within a position block)
    wh1 = params["cnn_h_conv1_w"].reshape(twoM, C * N).T        # (6N, 2m), rows (c, w)
    ww1 = params["cnn_w_conv1_w"].reshape(twoM, C * K).T        # (6K, 2m), rows (c, h)
    wh2 = params["cnn_h_conv2_w"].reshape(m, twoM).T            # (2m, m)
    ww2 = params["cnn_w_conv2_w"].reshape(m, twoM).T            # (2m, m)

    # block-diagonal conv1 over (K h-positions, then N w-positions)
    wc1 = jnp.zeros((Din, C1), jnp.float32)
    row = 0
    for h in range(K):
        wc1 = wc1.at[row:row + C * N, h * twoM:(h + 1) * twoM].set(wh1)
        row += C * N
    for w in range(N):
        wc1 = wc1.at[row:row + C * K, (K + w) * twoM:(K + w + 1) * twoM].set(ww1)
        row += C * K
    # block-diagonal 1x1 conv2
    wc2 = jnp.zeros((C1, C2), jnp.float32)
    for h in range(K):
        wc2 = wc2.at[h * twoM:(h + 1) * twoM, h * m:(h + 1) * m].set(wh2)
    for w in range(N):
        wc2 = wc2.at[(K + w) * twoM:(K + w + 1) * twoM, (K + w) * m:(K + w + 1) * m].set(ww2)
    # stacked linear_h / linear_w: rows (h, c) then (w, c) -> z = zh + zw in one matmul
    wlh = jnp.transpose(params["linear_h_w"].reshape(4 * m, m, K), (2, 1, 0)).reshape(K * m, 4 * m)
    wlw = jnp.transpose(params["linear_w_w"].reshape(4 * m, m, N), (2, 1, 0)).reshape(N * m, 4 * m)
    wl = jnp.concatenate([wlh, wlw], axis=0)

    mats = {
        "wc1": wc1, "wc2": wc2, "wl": wl,
        "w1": params["lin1_w"].T, "w2": params["lin2_w"].T,
        "wd1": params["dense1_w"].T, "wd2": params["dense2_w"].T,
        "w3": params["lin3_w"].T,
        "w4": jnp.zeros((2 * m, meta["act_pad"]), jnp.float32)
                 .at[:, :meta["act"]].set(params["lin4_w"].T),
    }
    w_pack = jnp.zeros((meta["wrows"], meta["maxc"]), jnp.float32)
    for name, (r0, rin, cout) in meta["woff"].items():
        w_pack = w_pack.at[r0:r0 + rin, :cout].set(mats[name])
    w_pack = w_pack.astype(jnp.bfloat16)

    biases = {
        "bc1": jnp.concatenate([jnp.tile(params["cnn_h_conv1_b"], K),
                                jnp.tile(params["cnn_w_conv1_b"], N)]),
        "bc2": jnp.concatenate([jnp.tile(params["cnn_h_conv2_b"], K),
                                jnp.tile(params["cnn_w_conv2_b"], N)]),
        "bl": params["linear_h_b"] + params["linear_w_b"],
        "b1": params["lin1_b"], "b2": params["lin2_b"],
        "bd1": params["dense1_b"], "bd2": params["dense2_b"], "b3": params["lin3_b"],
        "b4": jnp.zeros((meta["act_pad"],), jnp.float32).at[:meta["act"]].set(params["lin4_b"]),
    }
    b_pack = jnp.zeros((meta["brows"], meta["maxc"]), jnp.float32)
    for name, (i, cout) in meta["brow"].items():
        b_pack = b_pack.at[i, :cout].set(biases[name])
    return w_pack, b_pack


# ---------------------------------------------------------------------------
# Kernel
# ---------------------------------------------------------------------------
def _make_kernel(meta):
    woff, brow = meta["woff"], meta["brow"]
    bf16 = jnp.bfloat16

    def kernel(x_ref, w_ref, b_ref, out_ref):
        def W(name):                          # bf16 (in, out) weight view (static ds)
            r0, rin, cout = woff[name]
            return w_ref[pl.ds(r0, rin), pl.ds(0, cout)]

        def BIAS(name):                       # f32 (1, out) bias view
            r, cout = brow[name]
            return b_ref[pl.ds(r, 1), pl.ds(0, cout)]

        def mm(a_bf, name):                   # bf16 x bf16 -> f32 MXU matmul
            return jnp.dot(a_bf, W(name), preferred_element_type=jnp.float32)

        # ---- BiConvNet, both branches fused via block-diagonal conv weights ----
        xin = x_ref[...]                                              # (TB, Din) bf16
        a1 = _lrelu(mm(xin, "wc1") + BIAS("bc1")).astype(bf16)        # (TB, (K+N)*2m)
        a2 = _lrelu(mm(a1, "wc2") + BIAS("bc2")).astype(bf16)         # (TB, (K+N)*m)
        z = mm(a2, "wl") + BIAS("bl")                                 # zh + zw, (TB, 4m)

        # ---- trunk ----
        x0 = _lrelu(z).astype(bf16)
        xa = _lrelu(mm(x0, "w1") + BIAS("b1")).astype(bf16)           # (TB, 2m)
        x1 = mm(xa, "w2") + BIAS("b2")                                # (TB, m), f32

        # DenseNet(m): x2 = cat(x1, d1), x3 = cat(x2, d2)  (lane concats, <=1 vreg)
        x1b = x1.astype(bf16)
        d1 = _hswish(mm(x1b, "wd1") + BIAS("bd1"))                    # (TB, m)
        x2 = jnp.concatenate([x1, d1], axis=1)                        # (TB, 2m)
        d2 = _hswish(mm(x2.astype(bf16), "wd2") + BIAS("bd2"))        # (TB, 2m)
        x3 = jnp.concatenate([x2, d2], axis=1)                        # (TB, 4m)

        y = _hswish(mm(_lrelu(x3).astype(bf16), "w3") + BIAS("b3"))   # (TB, 2m)
        logits = mm(y.astype(bf16), "w4") + BIAS("b4")                # (TB, act_pad)

        # sigmoid -> scale to (-1, 1) -> L2 normalize; padded cols are exactly 0.
        v = (jax.nn.sigmoid(logits) - 0.5) * 2.0
        inv = jax.lax.rsqrt(jnp.sum(v * v, axis=1, keepdims=True) + 1e-12)
        out_ref[...] = v * inv

    return kernel


def _pick_batch_tile(B):
    # 8/16-row aligned tile; no divisibility requirement (batch is zero-padded up).
    # Cap at 512 rows/step and aim for >=2 grid steps (v7x megacore) when B allows.
    if B <= 16:
        return _rup(B, 8)
    return _rup(min(512, -(-B // 2)), 16)


# ---------------------------------------------------------------------------
# Forward
# ---------------------------------------------------------------------------
@functools.partial(jax.jit, static_argnames=("mid_dim",))
def policy_net_mimo_forward(mat_H, mat_W, mat_HW, w_pack, b_pack, mid_dim):
    B, K, N = mat_H.shape
    meta = _packing_meta(mid_dim, K, N)
    Din, act, act_pad = meta["Din"], meta["act"], meta["act_pad"]

    # torch: net_input = cat(vec_H, vec_W, vec_HW).reshape(B, 6, K, N)
    net_input = jnp.stack(
        [mat_H.real, mat_H.imag, mat_W.real, mat_W.imag, mat_HW.real, mat_HW.imag],
        axis=1).astype(jnp.float32)                                   # (B, 6, K, N)
    # Layout plumbing on the XLA side: one lane-dense slab, cols = (h,c,w) ++ (w,c,h)
    x_h = jnp.transpose(net_input, (0, 2, 1, 3)).reshape(B, K * 6 * N)
    x_w = jnp.transpose(net_input, (0, 3, 1, 2)).reshape(B, N * 6 * K)
    x_hw = jnp.concatenate([x_h, x_w], axis=1)                        # (B, 12*K*N)

    TB = _pick_batch_tile(B)
    gsteps = -(-B // TB)
    B_pad = gsteps * TB
    x_hw = jnp.pad(x_hw, ((0, B_pad - B), (0, Din - x_hw.shape[1]))).astype(jnp.bfloat16)

    kernel = _make_kernel(meta)
    out = pl.pallas_call(
        kernel,
        out_shape=jax.ShapeDtypeStruct((B_pad, act_pad), jnp.float32),
        grid=(gsteps,),
        in_specs=[
            pl.BlockSpec((TB, Din), lambda i: (i, 0)),
            pl.BlockSpec(w_pack.shape, lambda i: (0, 0)),   # VMEM-resident weight slab
            pl.BlockSpec(b_pack.shape, lambda i: (0, 0)),   # VMEM-resident bias slab
        ],
        out_specs=pl.BlockSpec((TB, act_pad), lambda i: (i, 0)),
        compiler_params=pltpu.CompilerParams(
            dimension_semantics=("parallel",),
            vmem_limit_bytes=32 * 1024 * 1024),
    )(x_hw, w_pack, b_pack)

    KN = K * N
    out = out[:B, :act]
    return (out[:, :KN] + 1j * out[:, KN:]).reshape(B, K, N)


if __name__ == "__main__":
    mid_dim, K, N, P = 16, 4, 4, 10.0   # P (total power) is unused in forward()
    B = 2
    key = jax.random.PRNGKey(0)
    kp, kh, kw, khw = jax.random.split(key, 4)
    params = init_params(kp, mid_dim, K, N)
    w_pack, b_pack = pack_params(params, mid_dim, K, N)   # one-time packing, outside jit

    def cplx(k):
        kr, ki = jax.random.split(k)
        return (jax.random.normal(kr, (B, K, N), jnp.float32)
                + 1j * jax.random.normal(ki, (B, K, N), jnp.float32))

    mat_H, mat_W, mat_HW = cplx(kh), cplx(kw), cplx(khw)

    mat_W_new = policy_net_mimo_forward(mat_H, mat_W, mat_HW, w_pack, b_pack,
                                        mid_dim=mid_dim)
    jax.block_until_ready(mat_W_new)
    assert mat_W_new.shape == (B, K, N)
    assert jnp.iscomplexobj(mat_W_new)
    assert bool(jnp.all(jnp.isfinite(mat_W_new.real)) & jnp.all(jnp.isfinite(mat_W_new.imag)))
    print("KERNEL_OK")
</pallas_src>

<mosaic_0001>
module attributes {stable_mosaic.version = 11 : i64} {
  func.func @kernel(%arg0: i32, %arg1: memref<8x256xbf16, #tpu.memory_space<vmem>>, %arg2: memref<880x256xbf16, #tpu.memory_space<vmem>>, %arg3: memref<16x256xf32, #tpu.memory_space<vmem>>, %arg4: memref<8x128xf32, #tpu.memory_space<vmem>>) attributes {dimension_semantics = [#tpu.dimension_semantics<parallel>], iteration_bounds = array<i64: 1>, scalar_prefetch = 0 : i64, scratch_operands = 0 : i64, tpu.core_type = #tpu.core_type<tc>, window_params = [{transform_indices = @transform_0, window_bounds = array<i64: 8, 256>}, {pipeline_mode = #tpu.pipeline_mode<synchronous>, transform_indices = @transform_1, window_bounds = array<i64: 880, 256>}, {pipeline_mode = #tpu.pipeline_mode<synchronous>, transform_indices = @transform_2, window_bounds = array<i64: 16, 256>}, {transform_indices = @transform_3, window_bounds = array<i64: 8, 128>}]} {
    %c0 = arith.constant 0 : index
    %c0_0 = arith.constant 0 : index
    %0 = vector.load %arg1[%c0, %c0_0] : memref<8x256xbf16, #tpu.memory_space<vmem>>, vector<8x256xbf16>
    %c0_1 = arith.constant 0 : index
    %c0_2 = arith.constant 0 : index
    %1 = vector.load %arg2[%c0_1, %c0_2] : memref<880x256xbf16, #tpu.memory_space<vmem>>, vector<256x256xbf16>
    %cst = arith.constant dense<0.000000e+00> : vector<8x256xf32>
    %2 = tpu.matmul %0, %1, %cst {dimension_numbers = #tpu.dot_dimension_numbers<[1], [0], [0], [1], [0, 0, 1, 1], [], []>} : vector<8x256xbf16>, vector<256x256xbf16>, vector<8x256xf32> -> vector<8x256xf32>
    %c0_3 = arith.constant 0 : index
    %c0_4 = arith.constant 0 : index
    %3 = vector.load %arg3[%c0_3, %c0_4] : memref<16x256xf32, #tpu.memory_space<vmem>>, vector<1x256xf32>
    %4 = vector.broadcast %3 : vector<1x256xf32> to vector<8x256xf32>
    %5 = arith.addf %2, %4 : vector<8x256xf32>
    %cst_5 = arith.constant 0.000000e+00 : f32
    %6 = vector.broadcast %cst_5 : f32 to vector<8x256xf32>
    %7 = arith.cmpf ogt, %5, %6 : vector<8x256xf32>
    %cst_6 = arith.constant 0.00999999977 : f32
    %8 = vector.broadcast %cst_6 : f32 to vector<8x256xf32>
    %9 = arith.mulf %8, %5 : vector<8x256xf32>
    %10 = arith.select %7, %5, %9 : vector<8x256xi1>, vector<8x256xf32>
    %11 = arith.truncf %10 : vector<8x256xf32> to vector<8x256xbf16>
    %c256 = arith.constant 256 : index
    %c0_7 = arith.constant 0 : index
    %12 = vector.load %arg2[%c256, %c0_7] : memref<880x256xbf16, #tpu.memory_space<vmem>>, vector<256x128xbf16>
    %cst_8 = arith.constant dense<0.000000e+00> : vector<8x128xf32>
    %13 = tpu.matmul %11, %12, %cst_8 {dimension_numbers = #tpu.dot_dimension_numbers<[1], [0], [0], [1], [0, 0, 1, 1], [], []>} : vector<8x256xbf16>, vector<256x128xbf16>, vector<8x128xf32> -> vector<8x128xf32>
    %c1 = arith.constant 1 : index
    %c0_9 = arith.constant 0 : index
    %14 = vector.load %arg3[%c1, %c0_9] : memref<16x256xf32, #tpu.memory_space<vmem>>, vector<1x128xf32>
    %15 = vector.broadcast %14 : vector<1x128xf32> to vector<8x128xf32>
    %16 = arith.addf %13, %15 : vector<8x128xf32>
    %cst_10 = arith.constant 0.000000e+00 : f32
    %17 = vector.broadcast %cst_10 : f32 to vector<8x128xf32>
    %18 = arith.cmpf ogt, %16, %17 : vector<8x128xf32>
    %cst_11 = arith.constant 0.00999999977 : f32
    %19 = vector.broadcast %cst_11 : f32 to vector<8x128xf32>
    %20 = arith.mulf %19, %16 : vector<8x128xf32>
    %21 = arith.select %18, %16, %20 : vector<8x128xi1>, vector<8x128xf32>
    %22 = arith.truncf %21 : vector<8x128xf32> to vector<8x128xbf16>
    %c512 = arith.constant 512 : index
    %c0_12 = arith.constant 0 : index
    %23 = vector.load %arg2[%c512, %c0_12] : memref<880x256xbf16, #tpu.memory_space<vmem>>, vector<128x64xbf16>
    %cst_13 = arith.constant dense<0.000000e+00> : vector<8x64xf32>
    %24 = tpu.matmul %22, %23, %cst_13 {dimension_numbers = #tpu.dot_dimension_numbers<[1], [0], [0], [1], [0, 0, 1, 1], [], []>} : vector<8x128xbf16>, vector<128x64xbf16>, vector<8x64xf32> -> vector<8x64xf32>
    %c2 = arith.constant 2 : index
    %c0_14 = arith.constant 0 : index
    %25 = vector.load %arg3[%c2, %c0_14] : memref<16x256xf32, #tpu.memory_space<vmem>>, vector<1x64xf32>
    %26 = vector.broadcast %25 : vector<1x64xf32> to vector<8x64xf32>
    %27 = arith.addf %24, %26 : vector<8x64xf32>
    %cst_15 = arith.constant 0.000000e+00 : f32
    %28 = vector.broadcast %cst_15 : f32 to vector<8x64xf32>
    %29 = arith.cmpf ogt, %27, %28 : vector<8x64xf32>
    %cst_16 = arith.constant 0.00999999977 : f32
    %30 = vector.broadcast %cst_16 : f32 to vector<8x64xf32>
    %31 = arith.mulf %30, %27 : vector<8x64xf32>
    %32 = arith.select %29, %27, %31 : vector<8x64xi1>, vector<8x64xf32>
    %33 = arith.truncf %32 : vector<8x64xf32> to vector<8x64xbf16>
    %c640 = arith.constant 640 : index
    %c0_17 = arith.constant 0 : index
    %34 = vector.load %arg2[%c640, %c0_17] : memref<880x256xbf16, #tpu.memory_space<vmem>>, vector<64x32xbf16>
    %cst_18 = arith.constant dense<0.000000e+00> : vector<8x32xf32>
    %35 = tpu.matmul %33, %34, %cst_18 {dimension_numbers = #tpu.dot_dimension_numbers<[1], [0], [0], [1], [0, 0, 1, 1], [], []>} : vector<8x64xbf16>, vector<64x32xbf16>, vector<8x32xf32> -> vector<8x32xf32>
    %c3 = arith.constant 3 : index
    %c0_19 = arith.constant 0 : index
    %36 = vector.load %arg3[%c3, %c0_19] : memref<16x256xf32, #tpu.memory_space<vmem>>, vector<1x32xf32>
    %37 = vector.broadcast %36 : vector<1x32xf32> to vector<8x32xf32>
    %38 = arith.addf %35, %37 : vector<8x32xf32>
    %cst_20 = arith.constant 0.000000e+00 : f32
    %39 = vector.broadcast %cst_20 : f32 to vector<8x32xf32>
    %40 = arith.cmpf ogt, %38, %39 : vector<8x32xf32>
    %cst_21 = arith.constant 0.00999999977 : f32
    %41 = vector.broadcast %cst_21 : f32 to vector<8x32xf32>
    %42 = arith.mulf %41, %38 : vector<8x32xf32>
    %43 = arith.select %40, %38, %42 : vector<8x32xi1>, vector<8x32xf32>
    %44 = arith.truncf %43 : vector<8x32xf32> to vector<8x32xbf16>
    %c704 = arith.constant 704 : index
    %c0_22 = arith.constant 0 : index
    %45 = vector.load %arg2[%c704, %c0_22] : memref<880x256xbf16, #tpu.memory_space<vmem>>, vector<32x16xbf16>
    %cst_23 = arith.constant dense<0.000000e+00> : vector<8x16xf32>
    %46 = tpu.matmul %44, %45, %cst_23 {dimension_numbers = #tpu.dot_dimension_numbers<[1], [0], [0], [1], [0, 0, 1, 1], [], []>} : vector<8x32xbf16>, vector<32x16xbf16>, vector<8x16xf32> -> vector<8x16xf32>
    %c4 = arith.constant 4 : index
    %c0_24 = arith.constant 0 : index
    %47 = vector.load %arg3[%c4, %c0_24] : memref<16x256xf32, #tpu.memory_space<vmem>>, vector<1x16xf32>
    %48 = vector.broadcast %47 : vector<1x16xf32> to vector<8x16xf32>
    %49 = arith.addf %46, %48 : vector<8x16xf32>
    %50 = arith.truncf %49 : vector<8x16xf32> to vector<8x16xbf16>
    %c736 = arith.constant 736 : index
    %c0_25 = arith.constant 0 : index
    %51 = vector.load %arg2[%c736, %c0_25] : memref<880x256xbf16, #tpu.memory_space<vmem>>, vector<16x16xbf16>
    %cst_26 = arith.constant dense<0.000000e+00> : vector<8x16xf32>
    %52 = tpu.matmul %50, %51, %cst_26 {dimension_numbers = #tpu.dot_dimension_numbers<[1], [0], [0], [1], [0, 0, 1, 1], [], []>} : vector<8x16xbf16>, vector<16x16xbf16>, vector<8x16xf32> -> vector<8x16xf32>
    %c5 = arith.constant 5 : index
    %c0_27 = arith.constant 0 : index
    %53 = vector.load %arg3[%c5, %c0_27] : memref<16x256xf32, #tpu.memory_space<vmem>>, vector<1x16xf32>
    %54 = vector.broadcast %53 : vector<1x16xf32> to vector<8x16xf32>
    %55 = arith.addf %52, %54 : vector<8x16xf32>
    %cst_28 = arith.constant 3.000000e+00 : f32
    %56 = vector.broadcast %cst_28 : f32 to vector<8x16xf32>
    %57 = arith.addf %55, %56 : vector<8x16xf32>
    %cst_29 = arith.constant 0.000000e+00 : f32
    %cst_30 = arith.constant 6.000000e+00 : f32
    %58 = vector.broadcast %cst_29 : f32 to vector<8x16xf32>
    %59 = arith.maximumf %58, %57 : vector<8x16xf32>
    %60 = vector.broadcast %cst_30 : f32 to vector<8x16xf32>
    %61 = arith.minimumf %60, %59 : vector<8x16xf32>
    %62 = arith.mulf %55, %61 : vector<8x16xf32>
    %cst_31 = arith.constant 0.166666672 : f32
    %63 = vector.broadcast %cst_31 : f32 to vector<8x16xf32>
    %64 = arith.mulf %62, %63 : vector<8x16xf32>
    %65 = tpu.concatenate %49, %64 in 1 : vector<8x16xf32>, vector<8x16xf32> -> vector<8x32xf32>
    %66 = arith.truncf %65 : vector<8x32xf32> to vector<8x32xbf16>
    %c752 = arith.constant 752 : index
    %c0_32 = arith.constant 0 : index
    %67 = vector.load %arg2[%c752, %c0_32] : memref<880x256xbf16, #tpu.memory_space<vmem>>, vector<32x32xbf16>
    %cst_33 = arith.constant dense<0.000000e+00> : vector<8x32xf32>
    %68 = tpu.matmul %66, %67, %cst_33 {dimension_numbers = #tpu.dot_dimension_numbers<[1], [0], [0], [1], [0, 0, 1, 1], [], []>} : vector<8x32xbf16>, vector<32x32xbf16>, vector<8x32xf32> -> vector<8x32xf32>
    %c6 = arith.constant 6 : index
    %c0_34 = arith.constant 0 : index
    %69 = vector.load %arg3[%c6, %c0_34] : memref<16x256xf32, #tpu.memory_space<vmem>>, vector<1x32xf32>
    %70 = vector.broadcast %69 : vector<1x32xf32> to vector<8x32xf32>
    %71 = arith.addf %68, %70 : vector<8x32xf32>
    %cst_35 = arith.constant 3.000000e+00 : f32
    %72 = vector.broadcast %cst_35 : f32 to vector<8x32xf32>
    %73 = arith.addf %71, %72 : vector<8x32xf32>
    %cst_36 = arith.constant 0.000000e+00 : f32
    %cst_37 = arith.constant 6.000000e+00 : f32
    %74 = vector.broadcast %cst_36 : f32 to vector<8x32xf32>
    %75 = arith.maximumf %74, %73 : vector<8x32xf32>
    %76 = vector.broadcast %cst_37 : f32 to vector<8x32xf32>
    %77 = arith.minimumf %76, %75 : vector<8x32xf32>
    %78 = arith.mulf %71, %77 : vector<8x32xf32>
    %cst_38 = arith.constant 0.166666672 : f32
    %79 = vector.broadcast %cst_38 : f32 to vector<8x32xf32>
    %80 = arith.mulf %78, %79 : vector<8x32xf32>
    %81 = tpu.concatenate %65, %80 in 1 : vector<8x32xf32>, vector<8x32xf32> -> vector<8x64xf32>
    %cst_39 = arith.constant 0.000000e+00 : f32
    %82 = vector.broadcast %cst_39 : f32 to vector<8x64xf32>
    %83 = arith.cmpf ogt, %81, %82 : vector<8x64xf32>
    %cst_40 = arith.constant 0.00999999977 : f32
    %84 = vector.broadcast %cst_40 : f32 to vector<8x64xf32>
    %85 = arith.mulf %84, %81 : vector<8x64xf32>
    %86 = arith.select %83, %81, %85 : vector<8x64xi1>, vector<8x64xf32>
    %87 = arith.truncf %86 : vector<8x64xf32> to vector<8x64xbf16>
    %c784 = arith.constant 784 : index
    %c0_41 = arith.constant 0 : index
    %88 = vector.load %arg2[%c784, %c0_41] : memref<880x256xbf16, #tpu.memory_space<vmem>>, vector<64x32xbf16>
    %cst_42 = arith.constant dense<0.000000e+00> : vector<8x32xf32>
    %89 = tpu.matmul %87, %88, %cst_42 {dimension_numbers = #tpu.dot_dimension_numbers<[1], [0], [0], [1], [0, 0, 1, 1], [], []>} : vector<8x64xbf16>, vector<64x32xbf16>, vector<8x32xf32> -> vector<8x32xf32>
    %c7 = arith.constant 7 : index
    %c0_43 = arith.constant 0 : index
    %90 = vector.load %arg3[%c7, %c0_43] : memref<16x256xf32, #tpu.memory_space<vmem>>, vector<1x32xf32>
    %91 = vector.broadcast %90 : vector<1x32xf32> to vector<8x32xf32>
    %92 = arith.addf %89, %91 : vector<8x32xf32>
    %cst_44 = arith.constant 3.000000e+00 : f32
    %93 = vector.broadcast %cst_44 : f32 to vector<8x32xf32>
    %94 = arith.addf %92, %93 : vector<8x32xf32>
    %cst_45 = arith.constant 0.000000e+00 : f32
    %cst_46 = arith.constant 6.000000e+00 : f32
    %95 = vector.broadcast %cst_45 : f32 to vector<8x32xf32>
    %96 = arith.maximumf %95, %94 : vector<8x32xf32>
    %97 = vector.broadcast %cst_46 : f32 to vector<8x32xf32>
    %98 = arith.minimumf %97, %96 : vector<8x32xf32>
    %99 = arith.mulf %92, %98 : vector<8x32xf32>
    %cst_47 = arith.constant 0.166666672 : f32
    %100 = vector.broadcast %cst_47 : f32 to vector<8x32xf32>
    %101 = arith.mulf %99, %100 : vector<8x32xf32>
    %102 = arith.truncf %101 : vector<8x32xf32> to vector<8x32xbf16>
    %c848 = arith.constant 848 : index
    %c0_48 = arith.constant 0 : index
    %103 = vector.load %arg2[%c848, %c0_48] : memref<880x256xbf16, #tpu.memory_space<vmem>>, vector<32x128xbf16>
    %cst_49 = arith.constant dense<0.000000e+00> : vector<8x128xf32>
    %104 = tpu.matmul %102, %103, %cst_49 {dimension_numbers = #tpu.dot_dimension_numbers<[1], [0], [0], [1], [0, 0, 1, 1], [], []>} : vector<8x32xbf16>, vector<32x128xbf16>, vector<8x128xf32> -> vector<8x128xf32>
    %c8 = arith.constant 8 : index
    %c0_50 = arith.constant 0 : index
    %105 = vector.load %arg3[%c8, %c0_50] : memref<16x256xf32, #tpu.memory_space<vmem>>, vector<1x128xf32>
    %106 = vector.broadcast %105 : vector<1x128xf32> to vector<8x128xf32>
    %107 = arith.addf %104, %106 : vector<8x128xf32>
    %108 = arith.negf %107 : vector<8x128xf32>
    %109 = math.exp %108 : vector<8x128xf32>
    %cst_51 = arith.constant 1.000000e+00 : f32
    %110 = vector.broadcast %cst_51 : f32 to vector<8x128xf32>
    %111 = arith.addf %110, %109 : vector<8x128xf32>
    %112 = arith.divf %110, %111 : vector<8x128xf32>
    %cst_52 = arith.constant 5.000000e-01 : f32
    %113 = vector.broadcast %cst_52 : f32 to vector<8x128xf32>
    %114 = arith.subf %112, %113 : vector<8x128xf32>
    %cst_53 = arith.constant 2.000000e+00 : f32
    %115 = vector.broadcast %cst_53 : f32 to vector<8x128xf32>
    %116 = arith.mulf %114, %115 : vector<8x128xf32>
    %117 = arith.mulf %116, %116 : vector<8x128xf32>
    %cst_54 = arith.constant dense<0.000000e+00> : vector<8xf32>
    %118 = vector.multi_reduction <add>, %117, %cst_54 [1] : vector<8x128xf32> to vector<8xf32>
    %119 = vector.shape_cast %118 : vector<8xf32> to vector<8x1xf32>
    %cst_55 = arith.constant 9.99999996E-13 : f32
    %120 = vector.broadcast %cst_55 : f32 to vector<8x1xf32>
    %121 = arith.addf %119, %120 : vector<8x1xf32>
    %122 = math.rsqrt %121 : vector<8x1xf32>
    %123 = vector.broadcast %122 : vector<8x1xf32> to vector<8x128xf32>
    %124 = arith.mulf %116, %123 : vector<8x128xf32>
    %c0_56 = arith.constant 0 : index
    %c0_57 = arith.constant 0 : index
    %125 = vector.load %arg4[%c0_56, %c0_57] : memref<8x128xf32, #tpu.memory_space<vmem>>, vector<8x128xf32>
    tpu.vector_store %arg4[%c0_56, %c0_57], %124 {strides = array<i32>} : memref<8x128xf32, #tpu.memory_space<vmem>>, vector<8x128xf32>,
    return
  }
  func.func @transform_0(%arg0: i32) -> (i32, i32) {
    %c0_i32 = arith.constant 0 : i32
    %c0_i32_0 = arith.constant 0 : i32
    return %arg0, %c0_i32 : i32, i32
  }
  func.func @transform_1(%arg0: i32) -> (i32, i32) {
    %c0_i32 = arith.constant 0 : i32
    %c0_i32_0 = arith.constant 0 : i32
    %c0_i32_1 = arith.constant 0 : i32
    return %c0_i32, %c0_i32_0 : i32, i32
  }
  func.func @transform_2(%arg0: i32) -> (i32, i32) {
    %c0_i32 = arith.constant 0 : i32
    %c0_i32_0 = arith.constant 0 : i32
    %c0_i32_1 = arith.constant 0 : i32
    return %c0_i32, %c0_i32_0 : i32, i32
  }
  func.func @transform_3(%arg0: i32) -> (i32, i32) {
    %c0_i32 = arith.constant 0 : i32
    %c0_i32_0 = arith.constant 0 : i32
    return %arg0, %c0_i32 : i32, i32
  }
}

</mosaic_0001>

<llo_original>
// kernel: custom-call
$region0: #{custom-call}
  %s0 = inlined_call_operand.hbm [shape: c64[2,4,4], index: 0, kind: input, shape index: {}]
  %s1 = inlined_call_operand.vmem [shape: f32[2,4,4], index: 1, kind: output, shape index: {}]
  $region1: #{custom-call} parent=0
    #allocation0 [shape = 's32[1]{0}', space=sflag, size = 0x4, scoped, tag = 'scoped memory for custom-call']
    %2 = vsyncpa [#allocation0], 0
    %s4 = sshll.u32 %s0, 4
    %s5 = int_to_ptr.hbm [resolvable:$true] %s4
    %s6 = sshll.u32 %s1, 4
    %s7 = int_to_ptr.vmem [resolvable:$true] %s6
    %9 = dma.hbm_to_vmem [thread:$0]  %s5, 128, %s7, [#allocation0]
    %11 = dma.done [#allocation0], 128
    %12 = vsyncpa [#allocation0], 1

// kernel: custom-call.1
$region0: #{custom-call.1}
  %s0 = inlined_call_operand.hbm [shape: c64[2,4,4], index: 0, kind: input, shape index: {}]
  %s1 = inlined_call_operand.vmem [shape: f32[2,4,4], index: 1, kind: output, shape index: {}]
  %s2 = scalar_lea.hbm %s0, 8
  $region1: #{custom-call.1} parent=0
    #allocation0 [shape = 's32[1]{0}', space=sflag, size = 0x4, scoped, tag = 'scoped memory for custom-call.1']
    %3 = vsyncpa [#allocation0], 0
    %s5 = sshll.u32 %s2, 4
    %s6 = int_to_ptr.hbm [resolvable:$true] %s5
    %s7 = sshll.u32 %s1, 4
    %s8 = int_to_ptr.vmem [resolvable:$true] %s7
    %10 = dma.hbm_to_vmem [thread:$0]  %s6, 128, %s8, [#allocation0]
    %12 = dma.done [#allocation0], 128
    %13 = vsyncpa [#allocation0], 1

// kernel: custom-call.6
$region0: #{custom-call.6}
  %s0 = inlined_call_operand.vmem [shape: f32[2,4,4], index: 0, kind: input, shape index: {}]
  %s1 = inlined_call_operand.vmem [shape: f32[2,4,4], index: 1, kind: input, shape index: {}]
  %s2 = inlined_call_operand.hbm [shape: c64[2,4,4], index: 2, kind: output, shape index: {}]
  %s3 = scalar_lea.hbm %s2, 8
  $region1: #{custom-call.6} parent=0
    #allocation0 [shape = 's32[1]{0}', space=sflag, size = 0x4, scoped, tag = 'scoped memory for custom-call.6']
    %4 = vsyncpa [#allocation0], 0
    %s6 = sshll.u32 %s0, 4
    %s7 = int_to_ptr.vmem [resolvable:$true] %s6
    %s8 = sshll.u32 %s2, 4
    %s9 = int_to_ptr.hbm [resolvable:$true] %s8
    %11 = dma.vmem_to_hbm [thread:$0]  %s7, 128, %s9, [#allocation0]
    %13 = dma.done [#allocation0], 128
    %14 = vsyncpa [#allocation0], 1
  $region2: #{custom-call.6} parent=0
    #allocation1 [shape = 's32[1]{0}', space=sflag, size = 0x4, scoped, tag = 'scoped memory for custom-call.6']
    %15 = vsyncpa [#allocation1], 0
    %s17 = sshll.u32 %s1, 4
    %s18 = int_to_ptr.vmem [resolvable:$true] %s17
    %s19 = sshll.u32 %s3, 4
    %s20 = int_to_ptr.hbm [resolvable:$true] %s19
    %22 = dma.vmem_to_hbm [thread:$0]  %s18, 128, %s20, [#allocation1]
    %24 = dma.done [#allocation1], 128
    %25 = vsyncpa [#allocation1], 1

// kernel: policy_net_mimo_forward.1
$region0: #{policy_net_mimo_forward.1}
  #allocation0 [shape = 'u32[]', space=smem, size = 0x4, offset = 0x4, fixed_abs, tag = 'smem constant byte address 0x4 - core index']
  #allocation1 [shape = 'u32[72,128]{1,0:T(1,128)}', space=vmem, size = 0x9000, scoped, tag = 'internal scratch']
  %s0 = inlined_call_operand.vmem [shape: bf16[8,256], index: 0, kind: input, shape index: {}]
  %s1 = inlined_call_operand.hbm [shape: bf16[880,256], index: 1, kind: input, shape index: {}]
  %s2 = inlined_call_operand.vmem [shape: f32[16,256], index: 2, kind: input, shape index: {}]
  %s3 = inlined_call_operand.vmem [shape: f32[8,128], index: 3, kind: output, shape index: {}]
  %s4 = sld [smem:[#allocation0]]
  $region26: #{policy_net_mimo_forward.1} parent=0
    _
  %s6 = ssub.s32 1, %s4
  %s7 = scalar_select 0, %s6, %s4
  $region1: #{policy_net_mimo_forward.1} parent=0
    #allocation2 [shape = 'u8[450560]{0}', space=vmem, size = 0x6e000, scoped, tag = 'input window, operand 1, single buffered']
    #allocation3 [shape = 's32[1]{0}', space=sflag, size = 0x4, scoped, tag = 'scoped memory for policy_net_mimo_forward.1']
    %8 = vsyncpa [#allocation3], 0
    // Predicated region
    $region2: #{policy_net_mimo_forward.1} parent=1 // pred_check
      _
    $region3: #{policy_net_mimo_forward.1} parent=1 // pred_check_branch
      %10 = sbr.rel (0) target = $region5
    $region4: #{policy_net_mimo_forward.1} parent=1 // pred_region
      _
    $region5: #{policy_net_mimo_forward.1} parent=1 // pred_fallthru
      _
    // Predicated region
    $region6: #{policy_net_mimo_forward.1} parent=1 // pred_check
      _
    $region7: #{policy_net_mimo_forward.1} parent=1 // pred_check_branch
      %12 = sbr.rel (0) target = $region9
    $region8: #{policy_net_mimo_forward.1} parent=1 // pred_region
      %14 = vsyncadd [#allocation3], 0
      %s15 = sshll.u32 %s1, 4
      %s16 = int_to_ptr.hbm [resolvable:$true] %s15
      %s17 = sshll.u32 [#allocation2], 4
      %s18 = int_to_ptr.vmem [resolvable:$true] %s17
      %23 = dma.hbm_to_vmem [thread:$0]  %s16, 14080, %s18, [#allocation3], 128, 128, 8
    $region9: #{policy_net_mimo_forward.1} parent=1 // pred_fallthru
      _
    // Predicated region
    $region10: #{policy_net_mimo_forward.1} parent=1 // pred_check
      _
    $region11: #{policy_net_mimo_forward.1} parent=1 // pred_check_branch
      %25 = sbr.rel (0) target = $region13
    $region12: #{policy_net_mimo_forward.1} parent=1 // pred_region
      _
    $region13: #{policy_net_mimo_forward.1} parent=1 // pred_fallthru
      _
    // Predicated region
    $region14: #{policy_net_mimo_forward.1} parent=1 // pred_check
      _
    $region15: #{policy_net_mimo_forward.1} parent=1 // pred_check_branch
      %27 = sbr.rel (0) target = $region17
    $region16: #{policy_net_mimo_forward.1} parent=1 // pred_region
      %29 = dma.done [#allocation3], 14080
    $region17: #{policy_net_mimo_forward.1} parent=1 // pred_fallthru
      _
    %v31 = vld [vmem:[%s0] sm:$0xff]
    %v32 = vld [vmem:[#allocation2] sm:$0xff]
    %v33 = vld [vmem:[#allocation2 + $0x8] sm:$0xff]
    %v34 = vld [vmem:[#allocation2 + $0x10] sm:$0xff]
    %v35 = vld [vmem:[#allocation2 + $0x18] sm:$0xff]
    %v36 = vld [vmem:[#allocation2 + $0x20] sm:$0xff]
    %v37 = vld [vmem:[#allocation2 + $0x28] sm:$0xff]
    %v38 = vld [vmem:[#allocation2 + $0x30] sm:$0xff]
    %v39 = vld [vmem:[#allocation2 + $0x38] sm:$0xff]
    %v40 = vld [vmem:[#allocation2 + $0x40] sm:$0xff]
    %v41 = vld [vmem:[#allocation2 + $0x48] sm:$0xff]
    %v42 = vld [vmem:[#allocation2 + $0x50] sm:$0xff]
    %v43 = vld [vmem:[#allocation2 + $0x58] sm:$0xff]
    %v44 = vld [vmem:[#allocation2 + $0x60] sm:$0xff]
    %v45 = vld [vmem:[#allocation2 + $0x68] sm:$0xff]
    %v46 = vld [vmem:[#allocation2 + $0x70] sm:$0xff]
    %v47 = vld [vmem:[#allocation2 + $0x78] sm:$0xff]
    %v48 = vld [vmem:[#allocation2 + $0x80] sm:$0xff]
    %v49 = vld [vmem:[#allocation2 + $0x88] sm:$0xff]
    %v50 = vld [vmem:[#allocation2 + $0x90] sm:$0xff]
    %v51 = vld [vmem:[#allocation2 + $0x98] sm:$0xff]
    %v52 = vld [vmem:[#allocation2 + $0xa0] sm:$0xff]
    %v53 = vld [vmem:[#allocation2 + $0xa8] sm:$0xff]
    %v54 = vld [vmem:[#allocation2 + $0xb0] sm:$0xff]
    %v55 = vld [vmem:[#allocation2 + $0xb8] sm:$0xff]
    %v56 = vld [vmem:[#allocation2 + $0xc0] sm:$0xff]
    %v57 = vld [vmem:[#allocation2 + $0xc8] sm:$0xff]
    %v58 = vld [vmem:[#allocation2 + $0xd0] sm:$0xff]
    %v59 = vld [vmem:[#allocation2 + $0xd8] sm:$0xff]
    %v60 = vld [vmem:[#allocation2 + $0xe0] sm:$0xff]
    %v61 = vld [vmem:[#allocation2 + $0xe8] sm:$0xff]
    %v62 = vld [vmem:[#allocation2 + $0xf0] sm:$0xff]
    %v63 = vld [vmem:[#allocation2 + $0xf8] sm:$0xff]
    %v64 = vld [vmem:[%s2] ss:$8 sm:$0x3]
    %v66 = vperm.slane %v64, 0
    %v67 = vperm.slane %v64, 1
    %v71 = vunpack.c.l.b16 %v31
    %v72 = vunpack.c.h.b16 %v31
    %v73 = vpack.c.b16 %v71, %v71
    %v74 = vpack.c.b16 %v72, %v72
    %v109 = vunpack.c.l.b16 %v32
    %v110 = vunpack.c.h.b16 %v32
    %v111 = vunpack.c.l.b16 %v33
    %v112 = vunpack.c.h.b16 %v33
    %v113 = vunpack.c.l.b16 %v34
    %v114 = vunpack.c.h.b16 %v34
    %v115 = vunpack.c.l.b16 %v35
    %v116 = vunpack.c.h.b16 %v35
    %v117 = vunpack.c.l.b16 %v36
    %v118 = vunpack.c.h.b16 %v36
    %v119 = vunpack.c.l.b16 %v37
    %v120 = vunpack.c.h.b16 %v37
    %v121 = vunpack.c.l.b16 %v38
    %v122 = vunpack.c.h.b16 %v38
    %v123 = vunpack.c.l.b16 %v39
    %v124 = vunpack.c.h.b16 %v39
    %v125 = vunpack.c.l.b16 %v40
    %v126 = vunpack.c.h.b16 %v40
    %v127 = vunpack.c.l.b16 %v41
    %v128 = vunpack.c.h.b16 %v41
    %v129 = vunpack.c.l.b16 %v42
    %v130 = vunpack.c.h.b16 %v42
    %v131 = vunpack.c.l.b16 %v43
    %v132 = vunpack.c.h.b16 %v43
    %v133 = vunpack.c.l.b16 %v44
    %v134 = vunpack.c.h.b16 %v44
    %v135 = vunpack.c.l.b16 %v45
    %v136 = vunpack.c.h.b16 %v45
    %v137 = vunpack.c.l.b16 %v46
    %v138 = vunpack.c.h.b16 %v46
    %v139 = vunpack.c.l.b16 %v47
    %v140 = vunpack.c.h.b16 %v47
    %v141 = vunpack.c.l.b16 %v48
    %v142 = vunpack.c.h.b16 %v48
    %v143 = vunpack.c.l.b16 %v49
    %v144 = vunpack.c.h.b16 %v49
    %v145 = vunpack.c.l.b16 %v50
    %v146 = vunpack.c.h.b16 %v50
    %v147 = vunpack.c.l.b16 %v51
    %v148 = vunpack.c.h.b16 %v51
    %v149 = vunpack.c.l.b16 %v52
    %v150 = vunpack.c.h.b16 %v52
    %v151 = vunpack.c.l.b16 %v53
    %v152 = vunpack.c.h.b16 %v53
    %v153 = vunpack.c.l.b16 %v54
    %v154 = vunpack.c.h.b16 %v54
    %v155 = vunpack.c.l.b16 %v55
    %v156 = vunpack.c.h.b16 %v55
    %v157 = vunpack.c.l.b16 %v56
    %v158 = vunpack.c.h.b16 %v56
    %v159 = vunpack.c.l.b16 %v57
    %v160 = vunpack.c.h.b16 %v57
    %v161 = vunpack.c.l.b16 %v58
    %v162 = vunpack.c.h.b16 %v58
    %v163 = vunpack.c.l.b16 %v59
    %v164 = vunpack.c.h.b16 %v59
    %v165 = vunpack.c.l.b16 %v60
    %v166 = vunpack.c.h.b16 %v60
    %v167 = vunpack.c.l.b16 %v61
    %v168 = vunpack.c.h.b16 %v61
    %v169 = vunpack.c.l.b16 %v62
    %v170 = vunpack.c.h.b16 %v62
    %v171 = vunpack.c.l.b16 %v63
    %v172 = vunpack.c.h.b16 %v63
    %v173 = vpack.c.b16 %v111, %v109
    %v174 = vpack.c.b16 %v112, %v110
    %v175 = vpack.c.b16 %v115, %v113
    %v176 = vpack.c.b16 %v116, %v114
    %v177 = vpack.c.b16 %v119, %v117
    %v178 = vpack.c.b16 %v120, %v118
    %v179 = vpack.c.b16 %v123, %v121
    %v180 = vpack.c.b16 %v124, %v122
    %v181 = vpack.c.b16 %v127, %v125
    %v182 = vpack.c.b16 %v128, %v126
    %v183 = vpack.c.b16 %v131, %v129
    %v184 = vpack.c.b16 %v132, %v130
    %v185 = vpack.c.b16 %v135, %v133
    %v186 = vpack.c.b16 %v136, %v134
    %v187 = vpack.c.b16 %v139, %v137
    %v188 = vpack.c.b16 %v140, %v138
    %v189 = vpack.c.b16 %v143, %v141
    %v190 = vpack.c.b16 %v144, %v142
    %v191 = vpack.c.b16 %v147, %v145
    %v192 = vpack.c.b16 %v148, %v146
    %v193 = vpack.c.b16 %v151, %v149
    %v194 = vpack.c.b16 %v152, %v150
    %v195 = vpack.c.b16 %v155, %v153
    %v196 = vpack.c.b16 %v156, %v154
    %v197 = vpack.c.b16 %v159, %v157
    %v198 = vpack.c.b16 %v160, %v158
    %v199 = vpack.c.b16 %v163, %v161
    %v200 = vpack.c.b16 %v164, %v162
    %v201 = vpack.c.b16 %v167, %v165
    %v202 = vpack.c.b16 %v168, %v166
    %v203 = vpack.c.b16 %v171, %v169
    %v204 = vpack.c.b16 %v172, %v170
    %237 = vmatpush.bf16.msra.mxu0 %v187
    %238 = vmatpush.bf16.msra.mxu0 %v185
    %239 = vmatpush.bf16.msra.mxu0 %v183
    %240 = vmatpush.bf16.msra.mxu0 %v181
    %241 = vmatpush.bf16.msra.mxu0 %v179
    %242 = vmatpush.bf16.msra.mxu0 %v177
    %243 = vmatpush.bf16.msra.mxu0 %v175
    %244 = vmatpush.bf16.msra.mxu0 %v173
    %245 = vmatmul.bf16.gmra.mxu0 %v73
    %v246 = vpop.f32.mrf.mxu0
    %v247 = vadd.f32 %v66, %v246
    %v248 = vpop.f32.mrf.mxu0
    %249 = vdwg.mxu0
    %250 = vmatpush.bf16.msra.mxu0 %v203
    %251 = vmatpush.bf16.msra.mxu0 %v201
    %252 = vmatpush.bf16.msra.mxu0 %v199
    %253 = vmatpush.bf16.msra.mxu0 %v197
    %254 = vmatpush.bf16.msra.mxu0 %v195
    %255 = vmatpush.bf16.msra.mxu0 %v193
    %256 = vmatpush.bf16.msra.mxu0 %v191
    %257 = vmatpush.bf16.msra.mxu0 %v189
    %258 = vmatmul.bf16.gmra.mxu0 %v74
    %v259 = vpop.f32.mrf.mxu0
    %v260 = vadd.f32 %v247, %v259
    %v261 = vpop.f32.mrf.mxu0
    %262 = vdwg.mxu0
    %263 = vmatpush.bf16.msra.mxu0 %v188
    %264 = vmatpush.bf16.msra.mxu0 %v186
    %265 = vmatpush.bf16.msra.mxu0 %v184
    %266 = vmatpush.bf16.msra.mxu0 %v182
    %267 = vmatpush.bf16.msra.mxu0 %v180
    %268 = vmatpush.bf16.msra.mxu0 %v178
    %269 = vmatpush.bf16.msra.mxu0 %v176
    %270 = vmatpush.bf16.msra.mxu0 %v174
    %271 = vmatmul.bf16.gmra.mxu0 %v73
    %v272 = vpop.f32.mrf.mxu0
    %v273 = vadd.f32 %v67, %v272
    %v274 = vpop.f32.mrf.mxu0
    %275 = vdwg.mxu0
    %276 = vmatpush.bf16.msra.mxu0 %v204
    %277 = vmatpush.bf16.msra.mxu0 %v202
    %278 = vmatpush.bf16.msra.mxu0 %v200
    %279 = vmatpush.bf16.msra.mxu0 %v198
    %280 = vmatpush.bf16.msra.mxu0 %v196
    %281 = vmatpush.bf16.msra.mxu0 %v194
    %282 = vmatpush.bf16.msra.mxu0 %v192
    %283 = vmatpush.bf16.msra.mxu0 %v190
    %284 = vmatmul.bf16.gmra.mxu0 %v74
    %v285 = vpop.f32.mrf.mxu0
    %v286 = vadd.f32 %v273, %v285
    %v287 = vpop.f32.mrf.mxu0
    %288 = vdwg.mxu0
    %vm289 = vcmp.gt.f32.partialorder %v260, 0.0
    %vm290 = vcmp.gt.f32.partialorder %v286, 0.0
    %v291 = vmul.f32 %v260, 0.01
    %v292 = vmul.f32 %v286, 0.01
    %v293 = vsel %vm289, %v260, %v291
    %v294 = vsel %vm290, %v286, %v292
    %v295 = vpack.c.bf16 %v293, %v293
    %v296 = vpack.c.bf16 %v294, %v294
    %v297 = vld [vmem:[#allocation2 + $0x100] sm:$0xf]
    %v298 = vld [vmem:[#allocation2 + $0x108] sm:$0xf]
    %v299 = vld [vmem:[#allocation2 + $0x110] sm:$0xf]
    %v300 = vld [vmem:[#allocation2 + $0x118] sm:$0xf]
    %v301 = vld [vmem:[#allocation2 + $0x120] sm:$0xf]
    %v302 = vld [vmem:[#allocation2 + $0x128] sm:$0xf]
    %v303 = vld [vmem:[#allocation2 + $0x130] sm:$0xf]
    %v304 = vld [vmem:[#allocation2 + $0x138] sm:$0xf]
    %v305 = vld [vmem:[#allocation2 + $0x140] sm:$0xf]
    %v306 = vld [vmem:[#allocation2 + $0x148] sm:$0xf]
    %v307 = vld [vmem:[#allocation2 + $0x150] sm:$0xf]
    %v308 = vld [vmem:[#allocation2 + $0x158] sm:$0xf]
    %v309 = vld [vmem:[#allocation2 + $0x160] sm:$0xf]
    %v310 = vld [vmem:[#allocation2 + $0x168] sm:$0xf]
    %v311 = vld [vmem:[#allocation2 + $0x170] sm:$0xf]
    %v312 = vld [vmem:[#allocation2 + $0x178] sm:$0xf]
    %v313 = vld [vmem:[#allocation2 + $0x180] sm:$0xf]
    %v314 = vld [vmem:[#allocation2 + $0x188] sm:$0xf]
    %v315 = vld [vmem:[#allocation2 + $0x190] sm:$0xf]
    %v316 = vld [vmem:[#allocation2 + $0x198] sm:$0xf]
    %v317 = vld [vmem:[#allocation2 + $0x1a0] sm:$0xf]
    %v318 = vld [vmem:[#allocation2 + $0x1a8] sm:$0xf]
    %v319 = vld [vmem:[#allocation2 + $0x1b0] sm:$0xf]
    %v320 = vld [vmem:[#allocation2 + $0x1b8] sm:$0xf]
    %v321 = vld [vmem:[#allocation2 + $0x1c0] sm:$0xf]
    %v322 = vld [vmem:[#allocation2 + $0x1c8] sm:$0xf]
    %v323 = vld [vmem:[#allocation2 + $0x1d0] sm:$0xf]
    %v324 = vld [vmem:[#allocation2 + $0x1d8] sm:$0xf]
    %v325 = vld [vmem:[#allocation2 + $0x1e0] sm:$0xf]
    %v326 = vld [vmem:[#allocation2 + $0x1e8] sm:$0xf]
    %v327 = vld [vmem:[#allocation2 + $0x1f0] sm:$0xf]
    %v328 = vld [vmem:[#allocation2 + $0x1f8] sm:$0xf]
    %v329 = vld [vmem:[%s2 + $0x1] ss:$0 sm:$0xff]
    %v362 = vunpack.c.l.b16 %v297
    %v363 = vunpack.c.l.b16 %v298
    %v364 = vunpack.c.l.b16 %v299
    %v365 = vunpack.c.l.b16 %v300
    %v366 = vunpack.c.l.b16 %v301
    %v367 = vunpack.c.l.b16 %v302
    %v368 = vunpack.c.l.b16 %v303
    %v369 = vunpack.c.l.b16 %v304
    %v370 = vunpack.c.l.b16 %v305
    %v371 = vunpack.c.l.b16 %v306
    %v372 = vunpack.c.l.b16 %v307
    %v373 = vunpack.c.l.b16 %v308
    %v374 = vunpack.c.l.b16 %v309
    %v375 = vunpack.c.l.b16 %v310
    %v376 = vunpack.c.l.b16 %v311
    %v377 = vunpack.c.l.b16 %v312
    %v378 = vunpack.c.l.b16 %v313
    %v379 = vunpack.c.l.b16 %v314
    %v380 = vunpack.c.l.b16 %v315
    %v381 = vunpack.c.l.b16 %v316
    %v382 = vunpack.c.l.b16 %v317
    %v383 = vunpack.c.l.b16 %v318
    %v384 = vunpack.c.l.b16 %v319
    %v385 = vunpack.c.l.b16 %v320
    %v386 = vunpack.c.l.b16 %v321
    %v387 = vunpack.c.l.b16 %v322
    %v388 = vunpack.c.l.b16 %v323
    %v389 = vunpack.c.l.b16 %v324
    %v390 = vunpack.c.l.b16 %v325
    %v391 = vunpack.c.l.b16 %v326
    %v392 = vunpack.c.l.b16 %v327
    %v393 = vunpack.c.l.b16 %v328
    %v394 = vpack.c.b16 %v363, %v362
    %v395 = vpack.c.b16 %v365, %v364
    %v396 = vpack.c.b16 %v367, %v366
    %v397 = vpack.c.b16 %v369, %v368
    %v398 = vpack.c.b16 %v371, %v370
    %v399 = vpack.c.b16 %v373, %v372
    %v400 = vpack.c.b16 %v375, %v374
    %v401 = vpack.c.b16 %v377, %v376
    %v402 = vpack.c.b16 %v379, %v378
    %v403 = vpack.c.b16 %v381, %v380
    %v404 = vpack.c.b16 %v383, %v382
    %v405 = vpack.c.b16 %v385, %v384
    %v406 = vpack.c.b16 %v387, %v386
    %v407 = vpack.c.b16 %v389, %v388
    %v408 = vpack.c.b16 %v391, %v390
    %v409 = vpack.c.b16 %v393, %v392
    %426 = vmatpush.bf16.msra.mxu0 %v401
    %427 = vmatpush.bf16.msra.mxu0 %v400
    %428 = vmatpush.bf16.msra.mxu0 %v399
    %429 = vmatpush.bf16.msra.mxu0 %v398
    %430 = vmatpush.bf16.msra.mxu0 %v397
    %431 = vmatpush.bf16.msra.mxu0 %v396
    %432 = vmatpush.bf16.msra.mxu0 %v395
    %433 = vmatpush.bf16.msra.mxu0 %v394
    %434 = vmatmul.bf16.gmra.mxu0 %v295
    %v435 = vpop.f32.mrf.mxu0
    %v436 = vadd.f32 %v329, %v435
    %v437 = vpop.f32.mrf.mxu0
    %438 = vdwg.mxu0
    %439 = vmatpush.bf16.msra.mxu0 %v409
    %440 = vmatpush.bf16.msra.mxu0 %v408
    %441 = vmatpush.bf16.msra.mxu0 %v407
    %442 = vmatpush.bf16.msra.mxu0 %v406
    %443 = vmatpush.bf16.msra.mxu0 %v405
    %444 = vmatpush.bf16.msra.mxu0 %v404
    %445 = vmatpush.bf16.msra.mxu0 %v403
    %446 = vmatpush.bf16.msra.mxu0 %v402
    %447 = vmatmul.bf16.gmra.mxu0 %v296
    %v448 = vpop.f32.mrf.mxu0
    %v449 = vadd.f32 %v436, %v448
    %v450 = vpop.f32.mrf.mxu0
    %451 = vdwg.mxu0
    %vm452 = vcmp.gt.f32.partialorder %v449, 0.0
    %v453 = vmul.f32 %v449, 0.01
    %v454 = vsel %vm452, %v449, %v453
    %v455 = vpack.c.bf16 %v454, %v454
    %v456 = vld [vmem:[#allocation2 + $0x200] sm:$0xf]
    %v457 = vld [vmem:[#allocation2 + $0x208] sm:$0xf]
    %v458 = vld [vmem:[#allocation2 + $0x210] sm:$0xf]
    %v459 = vld [vmem:[#allocation2 + $0x218] sm:$0xf]
    %v460 = vld [vmem:[#allocation2 + $0x220] sm:$0xf]
    %v461 = vld [vmem:[#allocation2 + $0x228] sm:$0xf]
    %v462 = vld [vmem:[#allocation2 + $0x230] sm:$0xf]
    %v463 = vld [vmem:[#allocation2 + $0x238] sm:$0xf]
    %v464 = vld [vmem:[#allocation2 + $0x240] sm:$0xf]
    %v465 = vld [vmem:[#allocation2 + $0x248] sm:$0xf]
    %v466 = vld [vmem:[#allocation2 + $0x250] sm:$0xf]
    %v467 = vld [vmem:[#allocation2 + $0x258] sm:$0xf]
    %v468 = vld [vmem:[#allocation2 + $0x260] sm:$0xf]
    %v469 = vld [vmem:[#allocation2 + $0x268] sm:$0xf]
    %v470 = vld [vmem:[#allocation2 + $0x270] sm:$0xf]
    %v471 = vld [vmem:[#allocation2 + $0x278] sm:$0xf]
    %v472 = vld [vmem:[%s2 + $0x2] ss:$0 sm:$0xff]
    %v489 = vunpack.c.l.b16 %v456
    %v490 = vunpack.c.l.b16 %v457
    %v491 = vunpack.c.l.b16 %v458
    %v492 = vunpack.c.l.b16 %v459
    %v493 = vunpack.c.l.b16 %v460
    %v494 = vunpack.c.l.b16 %v461
    %v495 = vunpack.c.l.b16 %v462
    %v496 = vunpack.c.l.b16 %v463
    %v497 = vunpack.c.l.b16 %v464
    %v498 = vunpack.c.l.b16 %v465
    %v499 = vunpack.c.l.b16 %v466
    %v500 = vunpack.c.l.b16 %v467
    %v501 = vunpack.c.l.b16 %v468
    %v502 = vunpack.c.l.b16 %v469
    %v503 = vunpack.c.l.b16 %v470
    %v504 = vunpack.c.l.b16 %v471
    %v505 = vpack.c.b16 %v490, %v489
    %v506 = vpack.c.b16 %v492, %v491
    %v507 = vpack.c.b16 %v494, %v493
    %v508 = vpack.c.b16 %v496, %v495
    %v509 = vpack.c.b16 %v498, %v497
    %v510 = vpack.c.b16 %v500, %v499
    %v511 = vpack.c.b16 %v502, %v501
    %v512 = vpack.c.b16 %v504, %v503
    %521 = vmatpush.bf16.msra.mxu0 %v512
    %522 = vmatpush.bf16.msra.mxu0 %v511
    %523 = vmatpush.bf16.msra.mxu0 %v510
    %524 = vmatpush.bf16.msra.mxu0 %v509
    %525 = vmatpush.bf16.msra.mxu0 %v508
    %526 = vmatpush.bf16.msra.mxu0 %v507
    %527 = vmatpush.bf16.msra.mxu0 %v506
    %528 = vmatpush.bf16.msra.mxu0 %v505
    %529 = vmatmul.bf16.gmra.mxu0 %v455
    %v530 = vpop.f32.mrf.mxu0
    %v531 = vadd.f32 %v472, %v530
    %v532 = vpop.f32.mrf.mxu0
    %533 = vdwg.mxu0
    %vm534 = vcmp.gt.f32.partialorder %v531, 0.0
    %v535 = vmul.f32 %v531, 0.01
    %v536 = vsel %vm534, %v531, %v535
    %v537 = vpack.c.bf16 %v536, %v536
    %v538 = vld [vmem:[#allocation2 + $0x280] sm:$0xf]
    %v539 = vld [vmem:[#allocation2 + $0x288] sm:$0xf]
    %v540 = vld [vmem:[#allocation2 + $0x290] sm:$0xf]
    %v541 = vld [vmem:[#allocation2 + $0x298] sm:$0xf]
    %v542 = vld [vmem:[#allocation2 + $0x2a0] sm:$0xf]
    %v543 = vld [vmem:[#allocation2 + $0x2a8] sm:$0xf]
    %v544 = vld [vmem:[#allocation2 + $0x2b0] sm:$0xf]
    %v545 = vld [vmem:[#allocation2 + $0x2b8] sm:$0xf]
    %v546 = vld [vmem:[%s2 + $0x3] ss:$0 sm:$0xff]
    %v555 = vunpack.c.l.b16 %v538
    %v556 = vunpack.c.l.b16 %v539
    %v557 = vunpack.c.l.b16 %v540
    %v558 = vunpack.c.l.b16 %v541
    %v559 = vunpack.c.l.b16 %v542
    %v560 = vunpack.c.l.b16 %v543
    %v561 = vunpack.c.l.b16 %v544
    %v562 = vunpack.c.l.b16 %v545
    %v563 = vpack.c.b16 %v556, %v555
    %v564 = vpack.c.b16 %v558, %v557
    %v565 = vpack.c.b16 %v560, %v559
    %v566 = vpack.c.b16 %v562, %v561
    %vm571 = vcmask 523264
    %v573 = vsel %vm571, %v537, 0
    %575 = vmatpush.bf16.msra.mxu0 0
    %576 = vmatpush.bf16.msra.mxu0 0
    %577 = vmatpush.bf16.msra.mxu0 0
    %578 = vmatpush.bf16.msra.mxu0 0
    %579 = vmatpush.bf16.msra.mxu0 %v566
    %580 = vmatpush.bf16.msra.mxu0 %v565
    %581 = vmatpush.bf16.msra.mxu0 %v564
    %582 = vmatpush.bf16.msra.mxu0 %v563
    %583 = vmatmul.bf16.gmra.mxu0 %v573
    %v584 = vpop.f32.mrf.mxu0
    %v585 = vadd.f32 %v546, %v584
    %v586 = vpop.f32.mrf.mxu0
    %587 = vdwg.mxu0
    %vm588 = vcmp.gt.f32.partialorder %v585, 0.0
    %v589 = vmul.f32 %v585, 0.01
    %v590 = vsel %vm588, %v585, %v589
    %v591 = vpack.c.bf16 %v590, %v590
    %v592 = vld [vmem:[#allocation2 + $0x2c0] sm:$0xf]
    %v593 = vld [vmem:[#allocation2 + $0x2c8] sm:$0xf]
    %v594 = vld [vmem:[#allocation2 + $0x2d0] sm:$0xf]
    %v595 = vld [vmem:[#allocation2 + $0x2d8] sm:$0xf]
    %v596 = vld [vmem:[%s2 + $0x4] ss:$0 sm:$0xff]
    %v601 = vunpack.c.l.b16 %v592
    %v602 = vunpack.c.l.b16 %v593
    %v603 = vunpack.c.l.b16 %v594
    %v604 = vunpack.c.l.b16 %v595
    %v605 = vpack.c.b16 %v602, %v601
    %v606 = vpack.c.b16 %v604, %v603
    %vm609 = vcmask 261120
    %v611 = vsel %vm609, %v591, 0
    %613 = vmatpush.bf16.msra.mxu0 0
    %614 = vmatpush.bf16.msra.mxu0 0
    %615 = vmatpush.bf16.msra.mxu0 0
    %616 = vmatpush.bf16.msra.mxu0 0
    %617 = vmatpush.bf16.msra.mxu0 0
    %618 = vmatpush.bf16.msra.mxu0 0
    %619 = vmatpush.bf16.msra.mxu0 %v606
    %620 = vmatpush.bf16.msra.mxu0 %v605
    %621 = vmatmul.bf16.gmra.mxu0 %v611
    %v622 = vpop.f32.mrf.mxu0
    %v623 = vadd.f32 %v596, %v622
    %v624 = vpop.f32.mrf.mxu0
    %625 = vdwg.mxu0
    %v626 = vpack.c.bf16 %v623, %v623
    %v627 = vld [vmem:[#allocation2 + $0x2e0] sm:$0xf]
    %v628 = vld [vmem:[#allocation2 + $0x2e8] sm:$0xf]
    %v629 = vld [vmem:[%s2 + $0x5] ss:$0 sm:$0xff]
    %v632 = vunpack.c.l.b16 %v627
    %v633 = vunpack.c.l.b16 %v628
    %v634 = vpack.c.b16 %v633, %v632
    %vm636 = vcmask 130048
    %v638 = vsel %vm636, %v626, 0
    %640 = vmatpush.bf16.msra.mxu0 0
    %641 = vmatpush.bf16.msra.mxu0 0
    %642 = vmatpush.bf16.msra.mxu0 0
    %643 = vmatpush.bf16.msra.mxu0 0
    %644 = vmatpush.bf16.msra.mxu0 0
    %645 = vmatpush.bf16.msra.mxu0 0
    %646 = vmatpush.bf16.msra.mxu0 0
    %647 = vmatpush.bf16.msra.mxu0 %v634
    %648 = vmatmul.bf16.gmra.mxu0 %v638
    %v649 = vpop.f32.mrf.mxu0
    %v650 = vadd.f32 %v629, %v649
    %v651 = vpop.f32.mrf.mxu0
    %652 = vdwg.mxu0
    %v653 = vadd.f32 %v650, 3.0
    %v654 = vmax.f32 %v653, 0.0
    %v655 = vmin.f32 %v654, 6.0
    %v656 = vmul.f32 %v650, %v655
    %v657 = vmul.f32 %v656, 0.16666667
    %659 = vrot.lane.b32.xlu0 %v657, 16
    %v660 = vpop.permute.xlu0 %659
    %v662 = vsel %vm636, %v623, %v660
    %v663 = vpack.c.bf16 %v662, %v662
    %v664 = vld [vmem:[#allocation2 + $0x2f0] sm:$0xf]
    %v665 = vld [vmem:[#allocation2 + $0x2f8] sm:$0xf]
    %v666 = vld [vmem:[#allocation2 + $0x300] sm:$0xf]
    %v667 = vld [vmem:[#allocation2 + $0x308] sm:$0xf]
    %v668 = vld [vmem:[%s2 + $0x6] ss:$0 sm:$0xff]
    %v673 = vunpack.c.l.b16 %v664
    %v674 = vunpack.c.l.b16 %v665
    %v675 = vunpack.c.l.b16 %v666
    %v676 = vunpack.c.l.b16 %v667
    %v677 = vpack.c.b16 %v674, %v673
    %v678 = vpack.c.b16 %v676, %v675
    %v682 = vsel %vm609, %v663, 0
    %684 = vmatpush.bf16.msra.mxu0 0
    %685 = vmatpush.bf16.msra.mxu0 0
    %686 = vmatpush.bf16.msra.mxu0 0
    %687 = vmatpush.bf16.msra.mxu0 0
    %688 = vmatpush.bf16.msra.mxu0 0
    %689 = vmatpush.bf16.msra.mxu0 0
    %690 = vmatpush.bf16.msra.mxu0 %v678
    %691 = vmatpush.bf16.msra.mxu0 %v677
    %692 = vmatmul.bf16.gmra.mxu0 %v682
    %v693 = vpop.f32.mrf.mxu0
    %v694 = vadd.f32 %v668, %v693
    %v695 = vpop.f32.mrf.mxu0
    %696 = vdwg.mxu0
    %v697 = vadd.f32 %v694, 3.0
    %v698 = vmax.f32 %v697, 0.0
    %v699 = vmin.f32 %v698, 6.0
    %v700 = vmul.f32 %v694, %v699
    %v701 = vmul.f32 %v700, 0.16666667
    %703 = vrot.lane.b32.xlu0 %v701, 32
    %v704 = vpop.permute.xlu0 %703
    %v706 = vsel %vm609, %v662, %v704
    %vm707 = vcmp.gt.f32.partialorder %v706, 0.0
    %v708 = vmul.f32 %v706, 0.01
    %v709 = vsel %vm707, %v706, %v708
    %v710 = vpack.c.bf16 %v709, %v709
    %v711 = vld [vmem:[#allocation2 + $0x310] sm:$0xf]
    %v712 = vld [vmem:[#allocation2 + $0x318] sm:$0xf]
    %v713 = vld [vmem:[#allocation2 + $0x320] sm:$0xf]
    %v714 = vld [vmem:[#allocation2 + $0x328] sm:$0xf]
    %v715 = vld [vmem:[#allocation2 + $0x330] sm:$0xf]
    %v716 = vld [vmem:[#allocation2 + $0x338] sm:$0xf]
    %v717 = vld [vmem:[#allocation2 + $0x340] sm:$0xf]
    %v718 = vld [vmem:[#allocation2 + $0x348] sm:$0xf]
    %v719 = vld [vmem:[%s2 + $0x7] ss:$0 sm:$0xff]
    %v728 = vunpack.c.l.b16 %v711
    %v729 = vunpack.c.l.b16 %v712
    %v730 = vunpack.c.l.b16 %v713
    %v731 = vunpack.c.l.b16 %v714
    %v732 = vunpack.c.l.b16 %v715
    %v733 = vunpack.c.l.b16 %v716
    %v734 = vunpack.c.l.b16 %v717
    %v735 = vunpack.c.l.b16 %v718
    %v736 = vpack.c.b16 %v729, %v728
    %v737 = vpack.c.b16 %v731, %v730
    %v738 = vpack.c.b16 %v733, %v732
    %v739 = vpack.c.b16 %v735, %v734
    %v745 = vsel %vm571, %v710, 0
    %747 = vmatpush.bf16.msra.mxu0 0
    %748 = vmatpush.bf16.msra.mxu0 0
    %749 = vmatpush.bf16.msra.mxu0 0
    %750 = vmatpush.bf16.msra.mxu0 0
    %751 = vmatpush.bf16.msra.mxu0 %v739
    %752 = vmatpush.bf16.msra.mxu0 %v738
    %753 = vmatpush.bf16.msra.mxu0 %v737
    %754 = vmatpush.bf16.msra.mxu0 %v736
    %755 = vmatmul.bf16.gmra.mxu0 %v745
    %v756 = vpop.f32.mrf.mxu0
    %v757 = vadd.f32 %v719, %v756
    %v758 = vpop.f32.mrf.mxu0
    %759 = vdwg.mxu0
    %v760 = vadd.f32 %v757, 3.0
    %v761 = vmax.f32 %v760, 0.0
    %v762 = vmin.f32 %v761, 6.0
    %v763 = vmul.f32 %v757, %v762
    %v764 = vmul.f32 %v763, 0.16666667
    %v765 = vpack.c.bf16 %v764, %v764
    %v766 = vld [vmem:[#allocation2 + $0x350] sm:$0xf]
    %v767 = vld [vmem:[#allocation2 + $0x358] sm:$0xf]
    %v768 = vld [vmem:[#allocation2 + $0x360] sm:$0xf]
    %v769 = vld [vmem:[#allocation2 + $0x368] sm:$0xf]
    %v770 = vld [vmem:[%s2 + $0x10] ss:$0 sm:$0xff]
    %v775 = vunpack.c.l.b16 %v766
    %v776 = vunpack.c.l.b16 %v767
    %v777 = vunpack.c.l.b16 %v768
    %v778 = vunpack.c.l.b16 %v769
    %v779 = vpack.c.b16 %v776, %v775
    %v780 = vpack.c.b16 %v778, %v777
    %v784 = vsel %vm609, %v765, 0
    %786 = vmatpush.bf16.msra.mxu0 0
    %787 = vmatpush.bf16.msra.mxu0 0
    %788 = vmatpush.bf16.msra.mxu0 0
    %789 = vmatpush.bf16.msra.mxu0 0
    %790 = vmatpush.bf16.msra.mxu0 0
    %791 = vmatpush.bf16.msra.mxu0 0
    %792 = vmatpush.bf16.msra.mxu0 %v780
    %793 = vmatpush.bf16.msra.mxu0 %v779
    %794 = vmatmul.bf16.gmra.mxu0 %v784
    %v795 = vpop.f32.mrf.mxu0
    %v796 = vadd.f32 %v770, %v795
    %v797 = vpop.f32.mrf.mxu0
    %798 = vdwg.mxu0
    %v799 = vxor.u32 %v796, 2147483648
    %v800 = vmul.f32 %v799, 1.442695
    %v801 = vpow.pop %v800
    %v802 = vadd.f32 %v801, 1.0
    %v803 = vrcp.pop %v802
    %v804 = vmul.f32 %v802, %v803
    %v805 = vsub.f32 1.0, %v804
    %v806 = vmul.f32 %v803, %v805
    %v807 = vadd.f32 %v803, %v806
    %vm808 = vweird.f32 %v802
    %vm809 = vweird.f32 %v803
    %vm810 = vmor %vm808, %vm809
    %v811 = vsel %vm810, %v803, %v807
    %v812 = vand.u32 2147483647, %v802
    %vm813 = vcmp.eq.f32.partialorder %v812, 8.507059e+37
    %v814 = vand.u32 %v802, 2147483648
    %v815 = vor.u32 1.1754944e-38, %v814
    %v816 = vsel %vm813, %v815, %v811
    %v817 = vmul.f32 1.0, %v816
    %v818 = vsub.f32 %v817, 0.5
    %v819 = vmul.f32 %v818, 2.0
    %v820 = vmul.f32 %v819, %v819
    %821 = vadd.xlane.f32.xlu0 %v820
    %v822 = vpop.xlane.xlu0 %821
    %v823 = vadd.f32 %v822, 1e-12
    %v824 = vrsqrt.pop %v823
    %v825 = vmul.f32 %v824, %v823
    %v826 = vmul.f32 %v825, %v824
    %v827 = vmul.f32 0.5, %v826
    %v828 = vsub.f32 1.5, %v827
    %v829 = vmul.f32 %v824, %v828
    %vm830 = vweird.f32 %v823
    %vm831 = vweird.f32 %v824
    %vm832 = vmor %vm830, %vm831
    %v833 = vsel %vm832, %v824, %v829
    %v834 = vmul.f32 %v819, %v833
    %835 = vst [vmem:[%s3] sm:$0xff] %v834
    // Predicated region
    $region18: #{policy_net_mimo_forward.1} parent=1 // pred_check
      _
    $region19: #{policy_net_mimo_forward.1} parent=1 // pred_check_branch
      %837 = sbr.rel (0) target = $region21
    $region20: #{policy_net_mimo_forward.1} parent=1 // pred_region
      _
    $region21: #{policy_net_mimo_forward.1} parent=1 // pred_fallthru
      _
    // Predicated region
    $region22: #{policy_net_mimo_forward.1} parent=1 // pred_check
      _
    $region23: #{policy_net_mimo_forward.1} parent=1 // pred_check_branch
      %839 = sbr.rel (0) target = $region25
    $region24: #{policy_net_mimo_forward.1} parent=1 // pred_region
      _
    $region25: #{policy_net_mimo_forward.1} parent=1 // pred_fallthru
      _
    %840 = vsyncpa [#allocation3], 1

</llo_original>
